<compile_context>
chip_gen: v5e
topology: v5e:2x2
jax: 0.10.0
libtpu: 0.0.40
codegen_flags: <defaults>
</compile_context>

<pallas_src>
import functools

import jax
import jax.numpy as jnp
from jax.experimental import pallas as pl
from jax.experimental.pallas import tpu as pltpu

LANES = 128
_DEFAULT_TM = 4096  # rows of 128 lanes per input block (2 MiB at f32)


def _round_up(x, m):
    return ((x + m - 1) // m) * m


def _sublane_pack(dtype):
    """Row-count multiple required for clean sublane packing of this dtype."""
    itemsize = jnp.dtype(dtype).itemsize
    return 8 * max(1, 4 // itemsize)   # f32 -> 8, bf16 -> 16, int8/bool -> 32


def _accuracy_count_kernel(thr_ref, pred_ref, gt_ref, out_ref, acc_ref, *,
                           steps, tm, full_rows):
    """Accumulate per-lane counts of ((pred > thr).cast == gt) into (8,128) int32."""
    chunk = pl.program_id(0)
    step = pl.program_id(1)

    @pl.when(step == 0)
    def _init():
        acc_ref[...] = jnp.zeros_like(acc_ref)

    thr = thr_ref[0]
    block_start = (chunk * steps + step) * tm
    is_interior = block_start + tm <= full_rows

    def _matches():
        pred = pred_ref[...]
        gt = gt_ref[...]
        # Bit-identical to PyTorch: (pred > thr).float() == gt, without a select.
        pred_bin = (pred > thr).astype(gt.dtype)
        return pred_bin == gt

    def _accumulate(match):
        counts = match.astype(jnp.int32).reshape(tm // 8, 8, LANES)
        acc_ref[...] += counts.sum(axis=0)

    # Fast path: fully in-bounds block, no masking at all.
    @pl.when(is_interior)
    def _fast():
        _accumulate(_matches())

    # Tail path: partial edge block or duplicated (fully masked) block.
    @pl.when(jnp.logical_not(is_interior))
    def _tail():
        match = _matches()
        row_ids = block_start + jax.lax.broadcasted_iota(jnp.int32, match.shape, 0)
        match = jnp.logical_and(match, row_ids < full_rows)
        _accumulate(match)

    @pl.when(step == pl.num_programs(1) - 1)
    def _store():
        out_ref[...] = acc_ref[...][None]


def accuracy_loss_pallas(pred, gt, threshold=0.5):
    """Pallas equivalent of AcuracyLoss.forward: scalar accuracy in [0, 1]."""
    assert pred.shape == gt.shape, "pred and gt must have the same shape"
    total = pred.size
    assert total > 0

    flat_pred = pred.reshape(-1)
    flat_gt = gt.reshape(-1)

    # Rows fed to the kernel: largest prefix that is a whole number of
    # sublane-packed (pack, 128) row groups. The tiny leftover (< pack*128 + 128
    # elements) is counted with plain jnp below — no jnp.pad HBM pass, and the
    # kernel needs no lane masking.
    pack = max(_sublane_pack(pred.dtype), _sublane_pack(gt.dtype))
    m_kernel = (total // (pack * LANES)) * pack
    kernel_elems = m_kernel * LANES

    correct = jnp.zeros((), jnp.float32)

    if kernel_elems < total:
        tp = flat_pred[kernel_elems:]
        tg = flat_gt[kernel_elems:]
        tp_bin = (tp > jnp.asarray(threshold, dtype=jnp.float32)).astype(tg.dtype)
        correct = correct + jnp.sum((tp_bin == tg).astype(jnp.float32))

    if m_kernel > 0:
        pred2d = flat_pred[:kernel_elems].reshape(m_kernel, LANES)
        gt2d = flat_gt[:kernel_elems].reshape(m_kernel, LANES)

        # Row tile: big enough to sit at the HBM roofline (2 inputs x 2 buffers
        # x 2 MiB = 8 MiB at f32), small enough for every generation's VMEM.
        tm = min(_DEFAULT_TM, _round_up(m_kernel, pack))
        nb = pl.cdiv(m_kernel, tm)          # number of row blocks
        n_chunks = 2 if nb >= 2 else 1      # leading "parallel" axis
        steps = pl.cdiv(nb, n_chunks)

        def row_block(c, s):
            idx = c * steps + s
            if n_chunks * steps > nb:
                # Duplicated tail block: contribution is fully masked in-kernel.
                idx = jnp.minimum(idx, nb - 1)
            return idx

        kernel = functools.partial(
            _accuracy_count_kernel, steps=steps, tm=tm, full_rows=m_kernel)

        thr = jnp.full((1,), threshold, dtype=jnp.float32)

        partials = pl.pallas_call(
            kernel,
            out_shape=jax.ShapeDtypeStruct((n_chunks, 8, LANES), jnp.int32),
            grid_spec=pltpu.PrefetchScalarGridSpec(
                num_scalar_prefetch=0,
                grid=(n_chunks, steps),
                in_specs=[
                    # threshold: scalar parameter in SMEM
                    pl.BlockSpec(memory_space=pltpu.MemorySpace.SMEM),
                    pl.BlockSpec((tm, LANES), lambda c, s: (row_block(c, s), 0)),
                    pl.BlockSpec((tm, LANES), lambda c, s: (row_block(c, s), 0)),
                ],
                out_specs=pl.BlockSpec((1, 8, LANES), lambda c, s: (c, 0, 0)),
                scratch_shapes=[pltpu.VMEM((8, LANES), jnp.int32)],
            ),
            compiler_params=pltpu.CompilerParams(
                dimension_semantics=("parallel", "arbitrary"),
                vmem_limit_bytes=32 * 1024 * 1024,
            ),
        )(thr, pred2d, gt2d)

        # int32 per-cell counts stay exact; fold to f32 for the final ratio.
        correct = correct + jnp.sum(partials.astype(jnp.float32))

    # correct / total ; .mean() of a scalar is the identity.
    return (correct / jnp.float32(total)).astype(jnp.float32)


def _reference(pred, gt, threshold=0.5):
    pred_bin = (pred > threshold).astype(jnp.float32)
    return jnp.sum((pred_bin == gt.astype(jnp.float32)).astype(jnp.float32)) / pred.size


if __name__ == "__main__":
    key = jax.random.PRNGKey(0)
    k_pred, k_gt, k_pred2, k_gt2 = jax.random.split(key, 4)

    # Small NCHW shapes consistent with a segmentation-style prediction/GT pair.
    B, C, H, W = 2, 4, 16, 16
    pred = jax.random.uniform(k_pred, (B, C, H, W), dtype=jnp.float32)
    gt = (jax.random.uniform(k_gt, (B, C, H, W), dtype=jnp.float32) > 0.5).astype(
        jnp.float32)

    loss = jax.block_until_ready(accuracy_loss_pallas(pred, gt))
    ref = _reference(pred, gt)
    assert jnp.allclose(loss, ref, atol=1e-6), (loss, ref)

    # Ragged case (element count not a multiple of 128): exercises the wrapper
    # tail path alongside the kernel.
    pred_r = jax.random.uniform(k_pred2, (5, 13, 17), dtype=jnp.float32)
    gt_r = (jax.random.uniform(k_gt2, (5, 13, 17), dtype=jnp.float32) > 0.5).astype(
        jnp.float32)
    loss_r = jax.block_until_ready(accuracy_loss_pallas(pred_r, gt_r))
    ref_r = _reference(pred_r, gt_r)
    assert jnp.allclose(loss_r, ref_r, atol=1e-6), (loss_r, ref_r)

    print("KERNEL_OK")
</pallas_src>

<mosaic_0001>
module attributes {stable_mosaic.version = 11 : i64} {
  func.func @_accuracy_count_kernel(%arg0: i32, %arg1: i32, %arg2: memref<1xf32, #tpu.memory_space<smem>>, %arg3: memref<16x128xf32, #tpu.memory_space<vmem>>, %arg4: memref<16x128xf32, #tpu.memory_space<vmem>>, %arg5: memref<1x8x128xi32, #tpu.memory_space<vmem>>, %arg6: memref<8x128xi32, #tpu.memory_space<vmem>>) attributes {dimension_semantics = [#tpu.dimension_semantics<parallel>, #tpu.dimension_semantics<arbitrary>], iteration_bounds = array<i64: 1, 1>, scalar_prefetch = 0 : i64, scratch_operands = 1 : i64, tpu.core_type = #tpu.core_type<tc>, window_params = [{transform_indices = @transform_0, window_bounds = array<i64: 1>}, {transform_indices = @transform_1, window_bounds = array<i64: 16, 128>}, {transform_indices = @transform_2, window_bounds = array<i64: 16, 128>}, {transform_indices = @transform_3, window_bounds = array<i64: 1, 8, 128>}]} {
    %c0_i32 = arith.constant 0 : i32
    %0 = arith.cmpi eq, %arg1, %c0_i32 : i32
    %1 = arith.extui %0 : i1 to i32
    %c0_i32_0 = arith.constant 0 : i32
    %2 = arith.cmpi ne, %1, %c0_i32_0 : i32
    scf.if %2 {
      %c0_i32_7 = arith.constant 0 : i32
      %17 = vector.broadcast %c0_i32_7 : i32 to vector<8x128xi32>
      %c0_8 = arith.constant 0 : index
      %c0_9 = arith.constant 0 : index
      %18 = vector.load %arg6[%c0_8, %c0_9] : memref<8x128xi32, #tpu.memory_space<vmem>>, vector<8x128xi32>
      tpu.vector_store %arg6[%c0_8, %c0_9], %17 {strides = array<i32>} : memref<8x128xi32, #tpu.memory_space<vmem>>, vector<8x128xi32>,
    } else {
    }
    %c0 = arith.constant 0 : index
    %3 = memref.load %arg2[%c0] : memref<1xf32, #tpu.memory_space<smem>>
    %c1_i32 = arith.constant 1 : i32
    %4 = arith.muli %arg0, %c1_i32 : i32
    %5 = arith.addi %4, %arg1 : i32
    %c16_i32 = arith.constant 16 : i32
    %6 = arith.muli %5, %c16_i32 : i32
    %c16_i32_1 = arith.constant 16 : i32
    %7 = arith.addi %6, %c16_i32_1 : i32
    %c16_i32_2 = arith.constant 16 : i32
    %8 = arith.cmpi sle, %7, %c16_i32_2 : i32
    %9 = arith.extui %8 : i1 to i32
    %c0_i32_3 = arith.constant 0 : i32
    %10 = arith.cmpi ne, %9, %c0_i32_3 : i32
    scf.if %10 {
      %c0_7 = arith.constant 0 : index
      %c0_8 = arith.constant 0 : index
      %17 = vector.load %arg3[%c0_7, %c0_8] : memref<16x128xf32, #tpu.memory_space<vmem>>, vector<16x128xf32>
      %c0_9 = arith.constant 0 : index
      %c0_10 = arith.constant 0 : index
      %18 = vector.load %arg4[%c0_9, %c0_10] : memref<16x128xf32, #tpu.memory_space<vmem>>, vector<16x128xf32>
      %19 = vector.broadcast %3 : f32 to vector<16x128xf32>
      %20 = arith.cmpf ogt, %17, %19 : vector<16x128xf32>
      %21 = arith.extui %20 : vector<16x128xi1> to vector<16x128xi32>
      %22 = arith.sitofp %21 : vector<16x128xi32> to vector<16x128xf32>
      %23 = arith.cmpf oeq, %22, %18 : vector<16x128xf32>
      %24 = arith.extui %23 : vector<16x128xi1> to vector<16x128xi32>
      %25 = vector.shape_cast %24 : vector<16x128xi32> to vector<2x8x128xi32>
      %c0_11 = arith.constant 0 : index
      %c0_12 = arith.constant 0 : index
      %26 = vector.load %arg6[%c0_11, %c0_12] : memref<8x128xi32, #tpu.memory_space<vmem>>, vector<8x128xi32>
      %cst = arith.constant dense<0> : vector<8x128xi32>
      %27 = vector.multi_reduction <add>, %25, %cst [0] : vector<2x8x128xi32> to vector<8x128xi32>
      %28 = arith.addi %26, %27 : vector<8x128xi32>
      %c0_13 = arith.constant 0 : index
      %c0_14 = arith.constant 0 : index
      %29 = vector.load %arg6[%c0_13, %c0_14] : memref<8x128xi32, #tpu.memory_space<vmem>>, vector<8x128xi32>
      tpu.vector_store %arg6[%c0_13, %c0_14], %28 {strides = array<i32>} : memref<8x128xi32, #tpu.memory_space<vmem>>, vector<8x128xi32>,
    } else {
    }
    %true = arith.constant true
    %11 = arith.xori %8, %true : i1
    %12 = arith.extui %11 : i1 to i32
    %c0_i32_4 = arith.constant 0 : i32
    %13 = arith.cmpi ne, %12, %c0_i32_4 : i32
    scf.if %13 {
      %c0_7 = arith.constant 0 : index
      %c0_8 = arith.constant 0 : index
      %17 = vector.load %arg3[%c0_7, %c0_8] : memref<16x128xf32, #tpu.memory_space<vmem>>, vector<16x128xf32>
      %c0_9 = arith.constant 0 : index
      %c0_10 = arith.constant 0 : index
      %18 = vector.load %arg4[%c0_9, %c0_10] : memref<16x128xf32, #tpu.memory_space<vmem>>, vector<16x128xf32>
      %19 = vector.broadcast %3 : f32 to vector<16x128xf32>
      %20 = arith.cmpf ogt, %17, %19 : vector<16x128xf32>
      %21 = arith.extui %20 : vector<16x128xi1> to vector<16x128xi32>
      %22 = arith.sitofp %21 : vector<16x128xi32> to vector<16x128xf32>
      %23 = arith.cmpf oeq, %22, %18 : vector<16x128xf32>
      %24 = tpu.iota {dimensions = array<i32: 0>} : vector<16x128xi32>
      %25 = vector.broadcast %6 : i32 to vector<16x128xi32>
      %26 = arith.addi %25, %24 : vector<16x128xi32>
      %c16_i32_11 = arith.constant 16 : i32
      %27 = vector.broadcast %c16_i32_11 : i32 to vector<16x128xi32>
      %28 = arith.cmpi slt, %26, %27 : vector<16x128xi32>
      %29 = arith.andi %23, %28 : vector<16x128xi1>
      %30 = arith.extui %29 : vector<16x128xi1> to vector<16x128xi32>
      %31 = vector.shape_cast %30 : vector<16x128xi32> to vector<2x8x128xi32>
      %c0_12 = arith.constant 0 : index
      %c0_13 = arith.constant 0 : index
      %32 = vector.load %arg6[%c0_12, %c0_13] : memref<8x128xi32, #tpu.memory_space<vmem>>, vector<8x128xi32>
      %cst = arith.constant dense<0> : vector<8x128xi32>
      %33 = vector.multi_reduction <add>, %31, %cst [0] : vector<2x8x128xi32> to vector<8x128xi32>
      %34 = arith.addi %32, %33 : vector<8x128xi32>
      %c0_14 = arith.constant 0 : index
      %c0_15 = arith.constant 0 : index
      %35 = vector.load %arg6[%c0_14, %c0_15] : memref<8x128xi32, #tpu.memory_space<vmem>>, vector<8x128xi32>
      tpu.vector_store %arg6[%c0_14, %c0_15], %34 {strides = array<i32>} : memref<8x128xi32, #tpu.memory_space<vmem>>, vector<8x128xi32>,
    } else {
    }
    %c0_i32_5 = arith.constant 0 : i32
    %14 = arith.cmpi eq, %arg1, %c0_i32_5 : i32
    %15 = arith.extui %14 : i1 to i32
    %c0_i32_6 = arith.constant 0 : i32
    %16 = arith.cmpi ne, %15, %c0_i32_6 : i32
    scf.if %16 {
      %c0_7 = arith.constant 0 : index
      %c0_8 = arith.constant 0 : index
      %17 = vector.load %arg6[%c0_7, %c0_8] : memref<8x128xi32, #tpu.memory_space<vmem>>, vector<8x128xi32>
      %18 = vector.shape_cast %17 : vector<8x128xi32> to vector<1x8x128xi32>
      %c0_9 = arith.constant 0 : index
      %c0_10 = arith.constant 0 : index
      %c0_11 = arith.constant 0 : index
      %19 = vector.load %arg5[%c0_9, %c0_10, %c0_11] : memref<1x8x128xi32, #tpu.memory_space<vmem>>, vector<1x8x128xi32>
      tpu.vector_store %arg5[%c0_9, %c0_10, %c0_11], %18 {strides = array<i32>} : memref<1x8x128xi32, #tpu.memory_space<vmem>>, vector<1x8x128xi32>,
    } else {
    }
    return
  }
  func.func @transform_0(%arg0: i32, %arg1: i32) -> i32 {
    %c0_i32 = arith.constant 0 : i32
    %c0_i32_0 = arith.constant 0 : i32
    return %c0_i32 : i32
  }
  func.func @transform_1(%arg0: i32, %arg1: i32) -> (i32, i32) {
    %c1_i32 = arith.constant 1 : i32
    %0 = arith.muli %arg0, %c1_i32 : i32
    %1 = arith.addi %0, %arg1 : i32
    %c0_i32 = arith.constant 0 : i32
    %c0_i32_0 = arith.constant 0 : i32
    return %1, %c0_i32 : i32, i32
  }
  func.func @transform_2(%arg0: i32, %arg1: i32) -> (i32, i32) {
    %c1_i32 = arith.constant 1 : i32
    %0 = arith.muli %arg0, %c1_i32 : i32
    %1 = arith.addi %0, %arg1 : i32
    %c0_i32 = arith.constant 0 : i32
    %c0_i32_0 = arith.constant 0 : i32
    return %1, %c0_i32 : i32, i32
  }
  func.func @transform_3(%arg0: i32, %arg1: i32) -> (i32, i32, i32) {
    %c0_i32 = arith.constant 0 : i32
    %c0_i32_0 = arith.constant 0 : i32
    %c0_i32_1 = arith.constant 0 : i32
    return %arg0, %c0_i32, %c0_i32_0 : i32, i32, i32
  }
}

</mosaic_0001>

<llo_original>
// kernel: tpu_custom_call.1
$region0: #{tpu_custom_call.1}
  #allocation0 [shape = 'u32[]', space=smem, size = 0x4, offset = 0x4, fixed_abs, tag = 'smem constant byte address 0x4 - core index']
  #allocation1 [shape = 'u32[72,128]{1,0:T(1,128)}', space=vmem, size = 0x9000, scoped, tag = 'internal scratch']
  #allocation2 [shape = 's32[8,128]{1,0:T(8,128)}', space=vmem, size = 0x1000, scoped, tag = 'scratch operand']
  #allocation3 [shape = 'f32[1]{0:T(128)S(6)}', space=smem, size = 0x200, scoped, tag = 'scoped memory for tpu_custom_call.1']
  %s0 = inlined_call_operand.<no memory space> [shape: f32[1], index: 0, kind: input, shape index: {}]
  %s1 = inlined_call_operand.hbm [shape: f32[16,128], index: 1, kind: input, shape index: {}]
  %s2 = inlined_call_operand.hbm [shape: f32[16,128], index: 2, kind: input, shape index: {}]
  %s3 = inlined_call_operand.hbm [shape: s32[1,8,128], index: 3, kind: output, shape index: {}]
  %s4 = sld [smem:[#allocation0]]
  $region46: #{tpu_custom_call.1} parent=0
    _
  %s6 = ssub.s32 1, %s4
  %s7 = scalar_select 0, %s6, %s4
  %8 = sst [smem:[#allocation3]] %s0
  $region1: #{tpu_custom_call.1} parent=0
    #allocation4 [shape = 'u8[8192]{0}', space=vmem, size = 0x2000, scoped, tag = 'input window, operand 1, single buffered']
    #allocation5 [shape = 's32[1]{0}', space=sflag, size = 0x4, scoped, tag = 'scoped memory for tpu_custom_call.1']
    #allocation6 [shape = 's32[1]{0}', space=sflag, size = 0x4, scoped, tag = 'scoped memory for tpu_custom_call.1']
    #allocation7 [shape = 'u8[8192]{0}', space=vmem, size = 0x2000, scoped, tag = 'input window, operand 2, single buffered']
    #allocation8 [shape = 's32[1]{0}', space=sflag, size = 0x4, scoped, tag = 'scoped memory for tpu_custom_call.1']
    #allocation9 [shape = 'u8[4096]{0}', space=vmem, size = 0x1000, scoped, tag = 'output window, operand 0, single buffered']
    %9 = vsyncpa [#allocation5], 0
    %10 = vsyncpa [#allocation8], 0
    %11 = vsyncpa [#allocation6], 0
    // Predicated region
    $region2: #{tpu_custom_call.1} parent=1 // pred_check
      _
    $region3: #{tpu_custom_call.1} parent=1 // pred_check_branch
      %13 = sbr.rel (0) target = $region5
    $region4: #{tpu_custom_call.1} parent=1 // pred_region
      _
    $region5: #{tpu_custom_call.1} parent=1 // pred_fallthru
      _
    // Predicated region
    $region6: #{tpu_custom_call.1} parent=1 // pred_check
      _
    $region7: #{tpu_custom_call.1} parent=1 // pred_check_branch
      %15 = sbr.rel (0) target = $region9
    $region8: #{tpu_custom_call.1} parent=1 // pred_region
      %s16 = sadd.s32 0, 0
      %s17 = smul.u32 2, %s16
      %19 = vsyncadd [#allocation5], 0
      %s20 = smul.addr %s17, 8
      %s21 = scalar_lea.hbm %s1, %s20
      %s22 = sshll.u32 %s21, 4
      %s23 = int_to_ptr.hbm [resolvable:$true] %s22
      %s24 = sshll.u32 [#allocation4], 4
      %s25 = int_to_ptr.vmem [resolvable:$true] %s24
      %30 = dma.hbm_to_vmem [thread:$0]  %s23, 256, %s25, [#allocation5], 128, 128, 8
    $region9: #{tpu_custom_call.1} parent=1 // pred_fallthru
      _
    // Predicated region
    $region10: #{tpu_custom_call.1} parent=1 // pred_check
      _
    $region11: #{tpu_custom_call.1} parent=1 // pred_check_branch
      %32 = sbr.rel (0) target = $region13
    $region12: #{tpu_custom_call.1} parent=1 // pred_region
      %s33 = sadd.s32 0, 0
      %s34 = smul.u32 2, %s33
      %36 = vsyncadd [#allocation8], 0
      %s37 = smul.addr %s34, 8
      %s38 = scalar_lea.hbm %s2, %s37
      %s39 = sshll.u32 %s38, 4
      %s40 = int_to_ptr.hbm [resolvable:$true] %s39
      %s41 = sshll.u32 [#allocation7], 4
      %s42 = int_to_ptr.vmem [resolvable:$true] %s41
      %47 = dma.hbm_to_vmem [thread:$0]  %s40, 256, %s42, [#allocation8], 128, 128, 8
    $region13: #{tpu_custom_call.1} parent=1 // pred_fallthru
      _
    // Predicated region
    $region14: #{tpu_custom_call.1} parent=1 // pred_check
      _
    $region15: #{tpu_custom_call.1} parent=1 // pred_check_branch
      %49 = sbr.rel (0) target = $region17
    $region16: #{tpu_custom_call.1} parent=1 // pred_region
      %51 = dma.done [#allocation5], 256
    $region17: #{tpu_custom_call.1} parent=1 // pred_fallthru
      _
    // Predicated region
    $region18: #{tpu_custom_call.1} parent=1 // pred_check
      _
    $region19: #{tpu_custom_call.1} parent=1 // pred_check_branch
      %53 = sbr.rel (0) target = $region21
    $region20: #{tpu_custom_call.1} parent=1 // pred_region
      %55 = dma.done [#allocation8], 256
    $region21: #{tpu_custom_call.1} parent=1 // pred_fallthru
      _
    %s56 = sadd.s32 0, 0
    %s57 = smul.u32 2, %s56
    %s58 = sadd.s32 0, 0
    %s59 = smul.u32 2, %s58
    %p60 = scmp.eq.s32.totalorder 0, 0
    // Predicated region
    $region22: #{tpu_custom_call.1} parent=1 // pred_check
      %p61 = pneg %p60
    $region23: #{tpu_custom_call.1} parent=1 // pred_check_branch
      %63 = sbr.rel (%p61) target = $region25
    $region24: #{tpu_custom_call.1} parent=1 // pred_region
      %64 = vst [vmem:[#allocation2] sm:$0xff] 0
    $region25: #{tpu_custom_call.1} parent=1 // pred_fallthru
      _
    %s65 = sld [smem:[#allocation3]]
    %s66 = sadd.s32 0, 0
    %s67 = smul.u32 %s66, 16
    %s68 = sadd.s32 %s67, 16
    %p69 = scmp.le.s32.totalorder %s68, 16
    // Predicated region
    $region26: #{tpu_custom_call.1} parent=1 // pred_check
      %p70 = pneg %p69
    $region27: #{tpu_custom_call.1} parent=1 // pred_check_branch
      %72 = sbr.rel (%p70) target = $region29
    $region28: #{tpu_custom_call.1} parent=1 // pred_region
      %v73 = vld [vmem:[#allocation4] sm:$0xff]
      %v74 = vld [vmem:[#allocation4 + $0x8] sm:$0xff]
      %v75 = vld [vmem:[#allocation7] sm:$0xff]
      %v76 = vld [vmem:[#allocation7 + $0x8] sm:$0xff]
      %v77 = vstv %s65
      %vm78 = vcmp.gt.f32.partialorder %v73, %v77
      %vm79 = vcmp.gt.f32.partialorder %v74, %v77
      %v80 = vsel %vm78, 1, 0
      %v81 = vsel %vm79, 1, 0
      %v82 = vcvt.s32.f32 %v80
      %v83 = vcvt.s32.f32 %v81
      %vm84 = vcmp.eq.f32.partialorder %v82, %v75
      %vm85 = vcmp.eq.f32.partialorder %v83, %v76
      %v86 = vsel %vm84, 1, 0
      %v87 = vsel %vm85, 1, 0
      %v88 = vld [vmem:[#allocation2] sm:$0xff]
      %v89 = vadd.s32 %v86, %v87
      %v90 = vadd.s32 %v88, %v89
      %91 = vst [vmem:[#allocation2] sm:$0xff] %v90
    $region29: #{tpu_custom_call.1} parent=1 // pred_fallthru
      _
    %p92 = scmp.gt.s32.totalorder %s68, 16
    // Predicated region
    $region30: #{tpu_custom_call.1} parent=1 // pred_check
      %p93 = pneg %p92
    $region31: #{tpu_custom_call.1} parent=1 // pred_check_branch
      %95 = sbr.rel (%p93) target = $region33
    $region32: #{tpu_custom_call.1} parent=1 // pred_region
      %v96 = vld [vmem:[#allocation4] sm:$0xff]
      %v97 = vld [vmem:[#allocation4 + $0x8] sm:$0xff]
      %v98 = vld [vmem:[#allocation7] sm:$0xff]
      %v99 = vld [vmem:[#allocation7 + $0x8] sm:$0xff]
      %v100 = vstv %s65
      %vm101 = vcmp.gt.f32.partialorder %v96, %v100
      %vm102 = vcmp.gt.f32.partialorder %v97, %v100
      %v103 = vsel %vm101, 1, 0
      %v104 = vsel %vm102, 1, 0
      %v105 = vcvt.s32.f32 %v103
      %v106 = vcvt.s32.f32 %v104
      %vm107 = vcmp.eq.f32.partialorder %v105, %v98
      %vm108 = vcmp.eq.f32.partialorder %v106, %v99
      %v109 = vlaneseq
      %v110 = vshrl.u32 %v109, 7
      %v111 = vadd.s32 %v110, 8
      %v112 = vstv %s67
      %v113 = vadd.s32 %v112, %v110
      %v114 = vadd.s32 %v112, %v111
      %vm115 = vcmp.lt.s32.totalorder %v113, 16
      %vm116 = vcmp.lt.s32.totalorder %v114, 16
      %vm117 = vmand %vm107, %vm115
      %vm118 = vmand %vm108, %vm116
      %v119 = vsel %vm117, 1, 0
      %v120 = vsel %vm118, 1, 0
      %v121 = vld [vmem:[#allocation2] sm:$0xff]
      %v122 = vadd.s32 %v119, %v120
      %v123 = vadd.s32 %v121, %v122
      %124 = vst [vmem:[#allocation2] sm:$0xff] %v123
    $region33: #{tpu_custom_call.1} parent=1 // pred_fallthru
      _
    // Predicated region
    $region34: #{tpu_custom_call.1} parent=1 // pred_check
      %p125 = pneg %p60
    $region35: #{tpu_custom_call.1} parent=1 // pred_check_branch
      %127 = sbr.rel (%p125) target = $region37
    $region36: #{tpu_custom_call.1} parent=1 // pred_region
      %v128 = vld [vmem:[#allocation2] sm:$0xff]
      %129 = vst [vmem:[#allocation9] sm:$0xff] %v128
    $region37: #{tpu_custom_call.1} parent=1 // pred_fallthru
      _
    // Predicated region
    $region38: #{tpu_custom_call.1} parent=1 // pred_check
      _
    $region39: #{tpu_custom_call.1} parent=1 // pred_check_branch
      %131 = sbr.rel (0) target = $region41
    $region40: #{tpu_custom_call.1} parent=1 // pred_region
      %133 = vsyncadd [#allocation6], 0
      %s135 = sshll.u32 [#allocation9], 4
      %s136 = int_to_ptr.vmem [resolvable:$true] %s135
      %s137 = sshll.u32 %s3, 4
      %s138 = int_to_ptr.hbm [resolvable:$true] %s137
      %140 = dma.vmem_to_hbm [thread:$0]  %s136, 128, %s138, [#allocation6]
    $region41: #{tpu_custom_call.1} parent=1 // pred_fallthru
      _
    // Predicated region
    $region42: #{tpu_custom_call.1} parent=1 // pred_check
      _
    $region43: #{tpu_custom_call.1} parent=1 // pred_check_branch
      %142 = sbr.rel (0) target = $region45
    $region44: #{tpu_custom_call.1} parent=1 // pred_region
      %144 = dma.done [#allocation6], 128
    $region45: #{tpu_custom_call.1} parent=1 // pred_fallthru
      _
    %145 = vsyncpa [#allocation5], 1
    %146 = vsyncpa [#allocation8], 1
    %147 = vsyncpa [#allocation6], 1

</llo_original>
